<compile_context>
chip_gen: v7x
topology: tpu7x:2x2x1
jax: 0.10.0
libtpu: 0.0.40
codegen_flags: <defaults>
</compile_context>

<pallas_src>
import functools

import jax
import jax.numpy as jnp
from jax.experimental import pallas as pl
from jax.experimental.pallas import tpu as pltpu

SUBLANE = 8            # f32 sublane height (batch-tile granularity)
SPLIT_THRESHOLD = 256  # below this batch size a single grid step is cheapest


def _round_up(n, m):
    return ((n + m - 1) // m) * m


def _affine_kernel(x_ref, wf_ref, bf_ref, o_ref):
    # y = x @ Wf + bf   (the three activation-free Linear layers folded into
    # one affine map; Wf/bf are tiny and stay VMEM-resident across grid steps)
    o_ref[...] = (
        jnp.dot(x_ref[...], wf_ref[...], preferred_element_type=jnp.float32)
        + bf_ref[...]
    ).astype(o_ref.dtype)


@functools.partial(jax.jit, static_argnames=("tile_b",))
def neural_net_forward(x, params, *, tile_b=8192):
    """Forward pass of the 3-layer linear stack as one batch-tiled Pallas kernel.

    x: (B, input_features) float32
    params: dict with w1 (in,hid), b1 (1,hid), w2 (hid,hid), b2 (1,hid),
            w3 (hid,out), b3 (1,out)  -- weights stored as (in, out) == W^T
            relative to PyTorch's (out, in).
    """
    B, in_f = x.shape
    out_f = params["w3"].shape[1]

    # ---- fold the three linears into a single affine map (exact in real
    # arithmetic, computed once in f32 on tiny matrices) --------------------
    wf = params["w1"] @ params["w2"] @ params["w3"]          # (in_f, out_f)
    bf = (params["b1"] @ params["w2"] @ params["w3"]
          + params["b2"] @ params["w3"]
          + params["b3"])                                    # (1, out_f)

    # ---- batch tiling ------------------------------------------------------
    if B <= SPLIT_THRESHOLD:
        # One grid step; batch block dim == full array dim (always legal),
        # so no batch padding or rounding is needed.
        tb = B
    else:
        # Ensure >= 2 grid steps so the "parallel" batch axis can use v7x's
        # second TensorCore; tile rows are a multiple of the f32 sublane.
        tb = min(tile_b, _round_up(pl.cdiv(B, 2), SUBLANE))
        tb = _round_up(tb, SUBLANE)
    b_pad = _round_up(B, tb)
    if b_pad != B:
        # Zero rows fall out of the kernel as bf (discarded by the final slice).
        x = jnp.pad(x, ((0, b_pad - B), (0, 0)))

    grid = (b_pad // tb,)

    # Wf / bf: full-shape blocks with a constant index_map -> DMA'd once and
    # kept resident in VMEM across all batch-grid steps.
    def resident(a):
        return pl.BlockSpec(a.shape, lambda i: (0,) * a.ndim)

    out = pl.pallas_call(
        _affine_kernel,
        out_shape=jax.ShapeDtypeStruct((b_pad, out_f), jnp.float32),
        grid=grid,
        in_specs=[
            pl.BlockSpec((tb, in_f), lambda i: (i, 0)),  # x streamed over batch
            resident(wf),
            resident(bf),
        ],
        out_specs=pl.BlockSpec((tb, out_f), lambda i: (i, 0)),
        compiler_params=pltpu.CompilerParams(
            dimension_semantics=("parallel",),   # megacore sharding on v7x
        ),
    )(x, wf, bf)

    return out if b_pad == B else out[:B]


def init_params(key, input_features, output_features, hidden_units=8):
    """Deterministic init mimicking nn.Linear's U(-1/sqrt(fan_in), 1/sqrt(fan_in))."""
    def linear(k, fan_in, fan_out):
        kw, kb = jax.random.split(k)
        bound = 1.0 / jnp.sqrt(fan_in)
        # stored as (in, out) == W^T relative to PyTorch's (out, in)
        w = jax.random.uniform(kw, (fan_in, fan_out), jnp.float32, -bound, bound)
        b = jax.random.uniform(kb, (1, fan_out), jnp.float32, -bound, bound)
        return w, b

    k1, k2, k3 = jax.random.split(key, 3)
    w1, b1 = linear(k1, input_features, hidden_units)
    w2, b2 = linear(k2, hidden_units, hidden_units)
    w3, b3 = linear(k3, hidden_units, output_features)
    return dict(w1=w1, b1=b1, w2=w2, b2=b2, w3=w3, b3=b3)


def reference_forward(x, p):
    # Pure-JAX f32 reference (matches the PyTorch module's forward layer-by-layer).
    h = x @ p["w1"] + p["b1"]
    h = h @ p["w2"] + p["b2"]
    return h @ p["w3"] + p["b3"]


if __name__ == "__main__":
    key = jax.random.PRNGKey(0)
    k_params, k_x = jax.random.split(key)

    input_features, output_features, hidden_units = 4, 3, 8
    batch = 8

    params = init_params(k_params, input_features, output_features, hidden_units)
    x = jax.random.normal(k_x, (batch, input_features), jnp.float32)

    out = jax.block_until_ready(neural_net_forward(x, params))
    ref = reference_forward(x, params)

    assert out.shape == (batch, output_features), out.shape
    # Same math, different rounding order (folded weights / MXU passes).
    assert jnp.allclose(out, ref, atol=2e-2, rtol=2e-2), (
        "mismatch vs JAX reference: max abs diff = "
        f"{float(jnp.max(jnp.abs(out - ref)))}")

    print("KERNEL_OK")
</pallas_src>

<mosaic_0001>
module attributes {stable_mosaic.version = 11 : i64} {
  func.func @_affine_kernel(%arg0: i32, %arg1: memref<8x4xf32, #tpu.memory_space<vmem>>, %arg2: memref<4x3xf32, #tpu.memory_space<vmem>>, %arg3: memref<1x3xf32, #tpu.memory_space<vmem>>, %arg4: memref<8x3xf32, #tpu.memory_space<vmem>>) attributes {dimension_semantics = [#tpu.dimension_semantics<parallel>], iteration_bounds = array<i64: 1>, scalar_prefetch = 0 : i64, scratch_operands = 0 : i64, tpu.core_type = #tpu.core_type<tc>, window_params = [{transform_indices = @transform_0, window_bounds = array<i64: 8, 4>}, {pipeline_mode = #tpu.pipeline_mode<synchronous>, transform_indices = @transform_1, window_bounds = array<i64: 4, 3>}, {pipeline_mode = #tpu.pipeline_mode<synchronous>, transform_indices = @transform_2, window_bounds = array<i64: 1, 3>}, {transform_indices = @transform_3, window_bounds = array<i64: 8, 3>}]} {
    %c0 = arith.constant 0 : index
    %c0_0 = arith.constant 0 : index
    %0 = vector.load %arg1[%c0, %c0_0] : memref<8x4xf32, #tpu.memory_space<vmem>>, vector<8x4xf32>
    %c0_1 = arith.constant 0 : index
    %c0_2 = arith.constant 0 : index
    %1 = vector.load %arg2[%c0_1, %c0_2] : memref<4x3xf32, #tpu.memory_space<vmem>>, vector<4x3xf32>
    %cst = arith.constant dense<0.000000e+00> : vector<8x3xf32>
    %2 = tpu.matmul %0, %1, %cst {dimension_numbers = #tpu.dot_dimension_numbers<[1], [0], [0], [1], [0, 0, 1, 1], [], []>} : vector<8x4xf32>, vector<4x3xf32>, vector<8x3xf32> -> vector<8x3xf32>
    %c0_3 = arith.constant 0 : index
    %c0_4 = arith.constant 0 : index
    %3 = vector.load %arg3[%c0_3, %c0_4] : memref<1x3xf32, #tpu.memory_space<vmem>>, vector<1x3xf32>
    %4 = vector.broadcast %3 : vector<1x3xf32> to vector<8x3xf32>
    %5 = arith.addf %2, %4 : vector<8x3xf32>
    %c0_5 = arith.constant 0 : index
    %c0_6 = arith.constant 0 : index
    %6 = vector.load %arg4[%c0_5, %c0_6] : memref<8x3xf32, #tpu.memory_space<vmem>>, vector<8x3xf32>
    tpu.vector_store %arg4[%c0_5, %c0_6], %5 {strides = array<i32>} : memref<8x3xf32, #tpu.memory_space<vmem>>, vector<8x3xf32>,
    return
  }
  func.func @transform_0(%arg0: i32) -> (i32, i32) {
    %c0_i32 = arith.constant 0 : i32
    %c0_i32_0 = arith.constant 0 : i32
    return %arg0, %c0_i32 : i32, i32
  }
  func.func @transform_1(%arg0: i32) -> (i32, i32) {
    %c0_i32 = arith.constant 0 : i32
    %c0_i32_0 = arith.constant 0 : i32
    %c0_i32_1 = arith.constant 0 : i32
    return %c0_i32, %c0_i32_0 : i32, i32
  }
  func.func @transform_2(%arg0: i32) -> (i32, i32) {
    %c0_i32 = arith.constant 0 : i32
    %c0_i32_0 = arith.constant 0 : i32
    %c0_i32_1 = arith.constant 0 : i32
    return %c0_i32, %c0_i32_0 : i32, i32
  }
  func.func @transform_3(%arg0: i32) -> (i32, i32) {
    %c0_i32 = arith.constant 0 : i32
    %c0_i32_0 = arith.constant 0 : i32
    return %arg0, %c0_i32 : i32, i32
  }
}

</mosaic_0001>

<llo_original>
// kernel: neural_net_forward.1
$region0: #{neural_net_forward.1}
  #allocation0 [shape = 'u32[]', space=smem, size = 0x4, offset = 0x4, fixed_abs, tag = 'smem constant byte address 0x4 - core index']
  #allocation1 [shape = 'u32[144,128]{1,0:T(1,128)}', space=vmem, size = 0x12000, scoped, tag = 'internal scratch']
  %s0 = inlined_call_operand.vmem [shape: f32[8,4], index: 0, kind: input, shape index: {}]
  %s1 = inlined_call_operand.vmem [shape: f32[4,3], index: 1, kind: input, shape index: {}]
  %s2 = inlined_call_operand.vmem [shape: f32[1,3], index: 2, kind: input, shape index: {}]
  %s3 = inlined_call_operand.vmem [shape: f32[8,3], index: 3, kind: output, shape index: {}]
  %s4 = sld [smem:[#allocation0]]
  $region22: #{neural_net_forward.1} parent=0
    _
  %s6 = ssub.s32 1, %s4
  %s7 = scalar_select 0, %s6, %s4
  // Predicated region
  $region2: #{neural_net_forward.1} parent=0 // pred_check
    _
  $region3: #{neural_net_forward.1} parent=0 // pred_check_branch
    %9 = sbr.rel (0) target = $region5
  $region4: #{neural_net_forward.1} parent=0 // pred_region
    _
  $region5: #{neural_net_forward.1} parent=0 // pred_fallthru
    _
  // Predicated region
  $region6: #{neural_net_forward.1} parent=0 // pred_check
    _
  $region7: #{neural_net_forward.1} parent=0 // pred_check_branch
    %11 = sbr.rel (0) target = $region9
  $region8: #{neural_net_forward.1} parent=0 // pred_region
    _
  $region9: #{neural_net_forward.1} parent=0 // pred_fallthru
    _
  // Predicated region
  $region10: #{neural_net_forward.1} parent=0 // pred_check
    _
  $region11: #{neural_net_forward.1} parent=0 // pred_check_branch
    %13 = sbr.rel (0) target = $region13
  $region12: #{neural_net_forward.1} parent=0 // pred_region
    _
  $region13: #{neural_net_forward.1} parent=0 // pred_fallthru
    _
  %v14 = vld [vmem:[%s0] sm:$0xff]
  %v15 = vld [vmem:[%s1] sm:$0xf]
  %v16 = vld [vmem:[%s2] sm:$0x1]
  %v18 = vlaneseq
  %v19 = vshrl.u32 %v18, 7
  %v20 = vsub.s32 0, %v19
  %v21 = vrot.slane %v16, %v20
  %vm23 = vcmask 31744
  %v25 = vsel %vm23, %v14, 0
  %vm27 = vcmask 1043456
  %v29 = vsel %vm27, %v15, 0
  %31 = vmatprep.subr.mxu0 0.0
  %32 = vmatpush1.msra.mxu0 %v29
  %33 = vmatprep.subr.mxu0 0.0
  %34 = vmatpush1.msra.mxu0 0.0
  %35 = vmatprep.subr.mxu0 0.0
  %36 = vmatpush1.msra.mxu0 0.0
  %37 = vmatprep.subr.mxu0 0.0
  %38 = vmatpush1.msra.mxu0 0.0
  %39 = vmatprep.subr.mxu0 0.0
  %40 = vmatpush1.msra.mxu0 0.0
  %41 = vmatprep.subr.mxu0 0.0
  %42 = vmatpush1.msra.mxu0 0.0
  %43 = vmatprep.subr.mxu0 0.0
  %44 = vmatpush1.msra.mxu0 0.0
  %45 = vmatprep.subr.mxu0 0.0
  %46 = vmatpush1.msra.mxu0 0.0
  %47 = vmatprep.subr.mxu0 0.0
  %48 = vmatpush1.msra.mxu0 0.0
  %49 = vmatprep.subr.mxu0 0.0
  %50 = vmatpush1.msra.mxu0 0.0
  %51 = vmatprep.subr.mxu0 0.0
  %52 = vmatpush1.msra.mxu0 0.0
  %53 = vmatprep.subr.mxu0 0.0
  %54 = vmatpush1.msra.mxu0 0.0
  %55 = vmatprep.subr.mxu0 0.0
  %56 = vmatpush1.msra.mxu0 0.0
  %57 = vmatprep.subr.mxu0 0.0
  %58 = vmatpush1.msra.mxu0 0.0
  %59 = vmatprep.subr.mxu0 0.0
  %60 = vmatpush1.msra.mxu0 0.0
  %61 = vmatprep.subr.mxu0 0.0
  %62 = vmatpush1.msra.mxu0 0.0
  %63 = vmatprep.subr.mxu0 0.0
  %64 = vmatpush1.msra.mxu0 0.0
  %65 = vmatprep.subr.mxu0 0.0
  %66 = vmatpush1.msra.mxu0 0.0
  %67 = vmatprep.subr.mxu0 0.0
  %68 = vmatpush1.msra.mxu0 0.0
  %69 = vmatprep.subr.mxu0 0.0
  %70 = vmatpush1.msra.mxu0 0.0
  %71 = vmatprep.subr.mxu0 0.0
  %72 = vmatpush1.msra.mxu0 0.0
  %73 = vmatprep.subr.mxu0 0.0
  %74 = vmatpush1.msra.mxu0 0.0
  %75 = vmatprep.subr.mxu0 0.0
  %76 = vmatpush1.msra.mxu0 0.0
  %77 = vmatprep.subr.mxu0 0.0
  %78 = vmatpush1.msra.mxu0 0.0
  %79 = vmatprep.subr.mxu0 0.0
  %80 = vmatpush1.msra.mxu0 0.0
  %81 = vmatprep.subr.mxu0 0.0
  %82 = vmatpush1.msra.mxu0 0.0
  %83 = vmatprep.subr.mxu0 0.0
  %84 = vmatpush1.msra.mxu0 0.0
  %85 = vmatprep.subr.mxu0 0.0
  %86 = vmatpush1.msra.mxu0 0.0
  %87 = vmatprep.subr.mxu0 0.0
  %88 = vmatpush1.msra.mxu0 0.0
  %89 = vmatprep.subr.mxu0 0.0
  %90 = vmatpush1.msra.mxu0 0.0
  %91 = vmatprep.subr.mxu0 0.0
  %92 = vmatpush1.msra.mxu0 0.0
  %93 = vmatprep.subr.mxu0 0.0
  %94 = vmatpush1.msra.mxu0 0.0
  %95 = vmatprep.mubr.f32.mxu0 0.0
  %96 = vmatmul.mubr.f32.gmra.mrb[0].mxu0 %v25
  %v97 = vpop.f32.mrb[0].mxu0
  %v98 = vadd.f32 %v21, %v97
  %v99 = vpop.f32.mrb[0].mxu0
  %100 = vdwg.mxu0
  %vm101 = vcmask 23552
  %102 = vst.msk [vmem:[%s3] sm:$0xff] %vm101, %v98
  // Predicated region
  $region14: #{neural_net_forward.1} parent=0 // pred_check
    _
  $region15: #{neural_net_forward.1} parent=0 // pred_check_branch
    %104 = sbr.rel (0) target = $region17
  $region16: #{neural_net_forward.1} parent=0 // pred_region
    _
  $region17: #{neural_net_forward.1} parent=0 // pred_fallthru
    _
  // Predicated region
  $region18: #{neural_net_forward.1} parent=0 // pred_check
    _
  $region19: #{neural_net_forward.1} parent=0 // pred_check_branch
    %106 = sbr.rel (0) target = $region21
  $region20: #{neural_net_forward.1} parent=0 // pred_region
    _
  $region21: #{neural_net_forward.1} parent=0 // pred_fallthru
    _

</llo_original>
